<compile_context>
chip_gen: v6e
topology: v6e:2x2x1
jax: 0.10.0
libtpu: 0.0.40
codegen_flags: <defaults>
</compile_context>

<pallas_src>
import jax
import jax.numpy as jnp
from jax.experimental import pallas as pl
from jax.experimental.pallas import tpu as pltpu

_LANE = 128


def _round_up(x: int, m: int) -> int:
    return (x + m - 1) // m * m


def _linear_head_kernel(z_ref, w_ref, b_ref, o_ref):
    """o = z @ W + b for one row tile.  z/W bf16, accumulate + bias in f32."""
    acc = jnp.dot(z_ref[...], w_ref[...],
                  preferred_element_type=jnp.float32)      # MXU, f32 accumulate
    o_ref[...] = (acc + b_ref[...]).astype(o_ref.dtype)    # VPU bias add


def _choose_tile_rows(rows: int, hidden: int, o_pad: int) -> int:
    """Largest lane-aligned row tile that fits a conservative VMEM budget."""
    try:
        vmem = pltpu.get_tpu_info().vmem_capacity_bytes    # 64 MiB v7x, 128 MiB v5e/v6e
    except Exception:  # pragma: no cover - info query unavailable
        vmem = 64 << 20
    # Headroom: double-buffered inputs/outputs + compiler scratch, and stay
    # under the smallest scoped-VMEM default (16 MiB on v5e).
    budget = min(vmem // 4, 12 << 20)
    per_row = 2 * hidden * 2 + 2 * o_pad * 4               # 2x bf16 z + 2x f32 out
    tm = budget // max(per_row, 1)
    tm = (tm // _LANE) * _LANE
    tm = max(_LANE, min(1024, tm))
    return min(tm, _round_up(rows, _LANE))


def linear_head(z_flat: jax.Array, w: jax.Array, b: jax.Array) -> jax.Array:
    """z_flat: (R, H) f32, w: (H, O) f32, b: (O,) f32 -> (R, O) f32."""
    R, H = z_flat.shape
    O = w.shape[1]
    O_pad = _round_up(O, _LANE)                            # lane-dense output width

    # Pad weights/bias to lane-dense width; cast streamed operands to bf16.
    w_p = jnp.zeros((H, O_pad), jnp.bfloat16).at[:, :O].set(w.astype(jnp.bfloat16))
    b_p = jnp.zeros((1, O_pad), jnp.float32).at[:, :O].set(b.astype(jnp.float32))

    TM = _choose_tile_rows(R, H, O_pad)
    R_pad = _round_up(R, TM)
    z_p = z_flat.astype(jnp.bfloat16)
    if R_pad != R:
        z_p = jnp.pad(z_p, ((0, R_pad - R), (0, 0)))

    grid = (R_pad // TM,)
    cost = pl.CostEstimate(
        flops=2 * R_pad * H * O_pad,
        transcendentals=0,
        bytes_accessed=2 * R_pad * H + 2 * H * O_pad + 4 * O_pad + 4 * R_pad * O_pad,
    )

    out = pl.pallas_call(
        _linear_head_kernel,
        out_shape=jax.ShapeDtypeStruct((R_pad, O_pad), jnp.float32),
        grid_spec=pltpu.PrefetchScalarGridSpec(
            num_scalar_prefetch=0,
            grid=grid,
            in_specs=[
                pl.BlockSpec((TM, H), lambda i: (i, 0)),      # z streams over rows
                pl.BlockSpec((H, O_pad), lambda i: (0, 0)),   # W resident in VMEM
                pl.BlockSpec((1, O_pad), lambda i: (0, 0)),   # b resident in VMEM
            ],
            out_specs=pl.BlockSpec((TM, O_pad), lambda i: (i, 0)),
        ),
        compiler_params=pltpu.CompilerParams(
            dimension_semantics=("parallel",)),               # v7x: shard over 2 TCs
        cost_estimate=cost,
    )(z_p, w_p, b_p)

    return out[:R, :O]


class PallasPredictor:
    """Concrete Predictor: shared linear head over each latent z[key].

    forward(x, z): y[key] = z[key] @ W + b, z[key]: (samples, tasks, hidden)
    -> y[key]: (samples, tasks, out_dim). All keys are fused into one kernel
    launch by concatenating their flattened row slabs.
    """

    def __init__(self, hidden_dim: int, out_dim: int):
        kw, kb = jax.random.split(jax.random.PRNGKey(42))
        self.w = jax.random.normal(kw, (hidden_dim, out_dim), jnp.float32) * 0.02
        self.b = jax.random.normal(kb, (out_dim,), jnp.float32) * 0.01
        self.out_dim = out_dim

    def forward(self, x: dict, z: dict) -> dict:
        keys = list(z.keys())
        flats, shapes = [], []
        for k in keys:
            samples, tasks, hidden = z[k].shape
            shapes.append((samples, tasks))
            flats.append(z[k].reshape(samples * tasks, hidden))
        z_all = flats[0] if len(flats) == 1 else jnp.concatenate(flats, axis=0)

        y_all = linear_head(z_all, self.w, self.b)            # single Pallas call

        out, off = {}, 0
        for k, (samples, tasks) in zip(keys, shapes):
            n = samples * tasks
            out[k] = y_all[off:off + n].reshape(samples, tasks, self.out_dim)
            off += n
        return out

    __call__ = forward


if __name__ == "__main__":
    samples, tasks, hidden, out_dim = 2, 4, 32, 16

    key = jax.random.PRNGKey(0)
    kx, kz1, kz2 = jax.random.split(key, 3)
    x = {"obs": jax.random.normal(kx, (samples, tasks, hidden), jnp.float32)}
    z = {
        "obs": jax.random.normal(kz1, (samples, tasks, hidden), jnp.float32),
        "reward": jax.random.normal(kz2, (samples, tasks, hidden), jnp.float32),
    }

    predictor = PallasPredictor(hidden_dim=hidden, out_dim=out_dim)
    y = predictor(x, z)
    y = jax.tree.map(jax.block_until_ready, y)

    # Correctness check against a bf16-consistent plain-JAX reference
    # (same bf16 operands + f32 accumulation as the kernel).
    w_bf = predictor.w.astype(jnp.bfloat16)
    for k, zk in z.items():
        ref = jnp.dot(zk.reshape(-1, hidden).astype(jnp.bfloat16), w_bf,
                      preferred_element_type=jnp.float32) + predictor.b
        ref = ref.reshape(samples, tasks, out_dim)
        assert y[k].shape == (samples, tasks, out_dim)
        assert jnp.allclose(y[k], ref, atol=1e-3, rtol=1e-3), k
        # Loose sanity check against the full-f32 reference as well.
        ref_f32 = zk.reshape(-1, hidden) @ predictor.w + predictor.b
        assert jnp.allclose(y[k], ref_f32.reshape(samples, tasks, out_dim),
                            atol=5e-2, rtol=5e-2), k

    print("KERNEL_OK")
</pallas_src>

<mosaic_0001>
module attributes {stable_mosaic.version = 11 : i64} {
  func.func @_linear_head_kernel(%arg0: i32, %arg1: memref<128x32xbf16, #tpu.memory_space<vmem>>, %arg2: memref<32x128xbf16, #tpu.memory_space<vmem>>, %arg3: memref<1x128xf32, #tpu.memory_space<vmem>>, %arg4: memref<128x128xf32, #tpu.memory_space<vmem>>) attributes {dimension_semantics = [#tpu.dimension_semantics<parallel>], iteration_bounds = array<i64: 1>, scalar_prefetch = 0 : i64, scratch_operands = 0 : i64, tpu.core_type = #tpu.core_type<tc>, window_params = [{transform_indices = @transform_0, window_bounds = array<i64: 128, 32>}, {pipeline_mode = #tpu.pipeline_mode<synchronous>, transform_indices = @transform_1, window_bounds = array<i64: 32, 128>}, {pipeline_mode = #tpu.pipeline_mode<synchronous>, transform_indices = @transform_2, window_bounds = array<i64: 1, 128>}, {transform_indices = @transform_3, window_bounds = array<i64: 128, 128>}]} {
    %c0 = arith.constant 0 : index
    %c0_0 = arith.constant 0 : index
    %0 = vector.load %arg1[%c0, %c0_0] : memref<128x32xbf16, #tpu.memory_space<vmem>>, vector<128x32xbf16>
    %c0_1 = arith.constant 0 : index
    %c0_2 = arith.constant 0 : index
    %1 = vector.load %arg2[%c0_1, %c0_2] : memref<32x128xbf16, #tpu.memory_space<vmem>>, vector<32x128xbf16>
    %cst = arith.constant dense<0.000000e+00> : vector<128x128xf32>
    %2 = tpu.matmul %0, %1, %cst {dimension_numbers = #tpu.dot_dimension_numbers<[1], [0], [0], [1], [0, 0, 1, 1], [], []>} : vector<128x32xbf16>, vector<32x128xbf16>, vector<128x128xf32> -> vector<128x128xf32>
    %c0_3 = arith.constant 0 : index
    %c0_4 = arith.constant 0 : index
    %3 = vector.load %arg3[%c0_3, %c0_4] : memref<1x128xf32, #tpu.memory_space<vmem>>, vector<1x128xf32>
    %4 = vector.broadcast %3 : vector<1x128xf32> to vector<128x128xf32>
    %5 = arith.addf %2, %4 : vector<128x128xf32>
    %c0_5 = arith.constant 0 : index
    %c0_6 = arith.constant 0 : index
    %6 = vector.load %arg4[%c0_5, %c0_6] : memref<128x128xf32, #tpu.memory_space<vmem>>, vector<128x128xf32>
    tpu.vector_store %arg4[%c0_5, %c0_6], %5 {strides = array<i32>} : memref<128x128xf32, #tpu.memory_space<vmem>>, vector<128x128xf32>,
    return
  }
  func.func @transform_0(%arg0: i32) -> (i32, i32) {
    %c0_i32 = arith.constant 0 : i32
    %c0_i32_0 = arith.constant 0 : i32
    return %arg0, %c0_i32 : i32, i32
  }
  func.func @transform_1(%arg0: i32) -> (i32, i32) {
    %c0_i32 = arith.constant 0 : i32
    %c0_i32_0 = arith.constant 0 : i32
    %c0_i32_1 = arith.constant 0 : i32
    return %c0_i32, %c0_i32_0 : i32, i32
  }
  func.func @transform_2(%arg0: i32) -> (i32, i32) {
    %c0_i32 = arith.constant 0 : i32
    %c0_i32_0 = arith.constant 0 : i32
    %c0_i32_1 = arith.constant 0 : i32
    return %c0_i32, %c0_i32_0 : i32, i32
  }
  func.func @transform_3(%arg0: i32) -> (i32, i32) {
    %c0_i32 = arith.constant 0 : i32
    %c0_i32_0 = arith.constant 0 : i32
    return %arg0, %c0_i32 : i32, i32
  }
}

</mosaic_0001>

<llo_original>
// kernel: tpu_custom_call.1
$region0: #{tpu_custom_call.1}
  #allocation0 [shape = 'u32[]', space=smem, size = 0x4, offset = 0x4, fixed_abs, tag = 'smem constant byte address 0x4 - core index']
  #allocation1 [shape = 'u32[144,128]{1,0:T(1,128)}', space=vmem, size = 0x12000, scoped, tag = 'internal scratch']
  %s0 = inlined_call_operand.vmem [shape: bf16[128,32], index: 0, kind: input, shape index: {}]
  %s1 = inlined_call_operand.vmem [shape: bf16[32,128], index: 1, kind: input, shape index: {}]
  %s2 = inlined_call_operand.vmem [shape: f32[1,128], index: 2, kind: input, shape index: {}]
  %s3 = inlined_call_operand.hbm [shape: f32[128,128], index: 3, kind: output, shape index: {}]
  %s4 = sld [smem:[#allocation0]]
  $region22: #{tpu_custom_call.1} parent=0
    _
  %s6 = ssub.s32 1, %s4
  %s7 = scalar_select 0, %s6, %s4
  $region1: #{tpu_custom_call.1} parent=0
    #allocation2 [shape = 'u8[65536]{0}', space=vmem, size = 0x10000, scoped, tag = 'output window, operand 0, single buffered']
    #allocation3 [shape = 's32[1]{0}', space=sflag, size = 0x4, scoped, tag = 'scoped memory for tpu_custom_call.1']
    %8 = vsyncpa [#allocation3], 0
    // Predicated region
    $region2: #{tpu_custom_call.1} parent=1 // pred_check
      _
    $region3: #{tpu_custom_call.1} parent=1 // pred_check_branch
      %10 = sbr.rel (0) target = $region5
    $region4: #{tpu_custom_call.1} parent=1 // pred_region
      _
    $region5: #{tpu_custom_call.1} parent=1 // pred_fallthru
      _
    // Predicated region
    $region6: #{tpu_custom_call.1} parent=1 // pred_check
      _
    $region7: #{tpu_custom_call.1} parent=1 // pred_check_branch
      %12 = sbr.rel (0) target = $region9
    $region8: #{tpu_custom_call.1} parent=1 // pred_region
      _
    $region9: #{tpu_custom_call.1} parent=1 // pred_fallthru
      _
    // Predicated region
    $region10: #{tpu_custom_call.1} parent=1 // pred_check
      _
    $region11: #{tpu_custom_call.1} parent=1 // pred_check_branch
      %14 = sbr.rel (0) target = $region13
    $region12: #{tpu_custom_call.1} parent=1 // pred_region
      _
    $region13: #{tpu_custom_call.1} parent=1 // pred_fallthru
      _
    %v16 = vld [vmem:[%s0] sm:$0xf]
    %v17 = vld [vmem:[%s0 + $0x4] sm:$0xf]
    %v18 = vld [vmem:[%s0 + $0x8] sm:$0xf]
    %v19 = vld [vmem:[%s0 + $0xc] sm:$0xf]
    %v20 = vld [vmem:[%s0 + $0x10] sm:$0xf]
    %v21 = vld [vmem:[%s0 + $0x14] sm:$0xf]
    %v22 = vld [vmem:[%s0 + $0x18] sm:$0xf]
    %v23 = vld [vmem:[%s0 + $0x1c] sm:$0xf]
    %v24 = vld [vmem:[%s0 + $0x20] sm:$0xf]
    %v25 = vld [vmem:[%s0 + $0x24] sm:$0xf]
    %v26 = vld [vmem:[%s0 + $0x28] sm:$0xf]
    %v27 = vld [vmem:[%s0 + $0x2c] sm:$0xf]
    %v28 = vld [vmem:[%s0 + $0x30] sm:$0xf]
    %v29 = vld [vmem:[%s0 + $0x34] sm:$0xf]
    %v30 = vld [vmem:[%s0 + $0x38] sm:$0xf]
    %v31 = vld [vmem:[%s0 + $0x3c] sm:$0xf]
    %v32 = vld [vmem:[%s1] sm:$0xf]
    %v33 = vld [vmem:[%s1 + $0x4] sm:$0xf]
    %v34 = vld [vmem:[%s1 + $0x8] sm:$0xf]
    %v35 = vld [vmem:[%s1 + $0xc] sm:$0xf]
    %v36 = vld [vmem:[%s2] sm:$0x1]
    %v38 = vlaneseq
    %v39 = vshrl.u32 %v38, 7
    %v40 = vsub.s32 0, %v39
    %v41 = vrot.slane %v36, %v40
    %v59 = vunpack.c.l.b16 %v16
    %v60 = vunpack.c.l.b16 %v17
    %v61 = vunpack.c.l.b16 %v18
    %v62 = vunpack.c.l.b16 %v19
    %v63 = vunpack.c.l.b16 %v20
    %v64 = vunpack.c.l.b16 %v21
    %v65 = vunpack.c.l.b16 %v22
    %v66 = vunpack.c.l.b16 %v23
    %v67 = vunpack.c.l.b16 %v24
    %v68 = vunpack.c.l.b16 %v25
    %v69 = vunpack.c.l.b16 %v26
    %v70 = vunpack.c.l.b16 %v27
    %v71 = vunpack.c.l.b16 %v28
    %v72 = vunpack.c.l.b16 %v29
    %v73 = vunpack.c.l.b16 %v30
    %v74 = vunpack.c.l.b16 %v31
    %v75 = vpack.c.b16 %v60, %v59
    %v76 = vpack.c.b16 %v62, %v61
    %v77 = vpack.c.b16 %v64, %v63
    %v78 = vpack.c.b16 %v66, %v65
    %v79 = vpack.c.b16 %v68, %v67
    %v80 = vpack.c.b16 %v70, %v69
    %v81 = vpack.c.b16 %v72, %v71
    %v82 = vpack.c.b16 %v74, %v73
    %v87 = vunpack.c.l.b16 %v32
    %v88 = vunpack.c.l.b16 %v33
    %v89 = vunpack.c.l.b16 %v34
    %v90 = vunpack.c.l.b16 %v35
    %v91 = vpack.c.b16 %v88, %v87
    %v92 = vpack.c.b16 %v90, %v89
    %vm95 = vcmask 261120
    %v97 = vsel %vm95, %v75, 0
    %v100 = vsel %vm95, %v76, 0
    %v103 = vsel %vm95, %v77, 0
    %v106 = vsel %vm95, %v78, 0
    %v109 = vsel %vm95, %v79, 0
    %v112 = vsel %vm95, %v80, 0
    %v115 = vsel %vm95, %v81, 0
    %v118 = vsel %vm95, %v82, 0
    %120 = vmatprep.subr.bf16.mxu0 0
    %121 = vmatpush1.bf16.msra.mxu0 0
    %122 = vmatprep.subr.bf16.mxu0 0
    %123 = vmatpush1.bf16.msra.mxu0 0
    %124 = vmatprep.subr.bf16.mxu0 0
    %125 = vmatpush1.bf16.msra.mxu0 0
    %126 = vmatprep.subr.bf16.mxu0 0
    %127 = vmatpush1.bf16.msra.mxu0 0
    %128 = vmatprep.subr.bf16.mxu0 0
    %129 = vmatpush1.bf16.msra.mxu0 0
    %130 = vmatprep.subr.bf16.mxu0 0
    %131 = vmatpush1.bf16.msra.mxu0 0
    %132 = vmatprep.subr.bf16.mxu0 0
    %133 = vmatpush1.bf16.msra.mxu0 %v92
    %134 = vmatprep.subr.bf16.mxu0 0
    %135 = vmatpush1.bf16.msra.mxu0 %v91
    %136 = vmatprep.subr.bf16.mxu0 0
    %137 = vmatpush2.bf16.msra.mxu0 0
    %138 = vmatprep.subr.bf16.mxu0 0
    %139 = vmatpush2.bf16.msra.mxu0 0
    %140 = vmatprep.subr.bf16.mxu0 0
    %141 = vmatpush2.bf16.msra.mxu0 0
    %142 = vmatprep.subr.bf16.mxu0 0
    %143 = vmatpush2.bf16.msra.mxu0 0
    %144 = vmatprep.subr.bf16.mxu0 0
    %145 = vmatpush2.bf16.msra.mxu0 0
    %146 = vmatprep.subr.bf16.mxu0 0
    %147 = vmatpush2.bf16.msra.mxu0 0
    %148 = vmatprep.subr.bf16.mxu0 0
    %149 = vmatpush2.bf16.msra.mxu0 0
    %150 = vmatprep.subr.bf16.mxu0 0
    %151 = vmatpush2.bf16.msra.mxu0 0
    %152 = vmatprep.mubr.bf16.mxu0 0
    %153 = vmatmul.mubr.bf16.gmra.mxu0 %v97
    %v154 = vpop.f32.mrf.mxu0
    %v155 = vadd.f32 %v41, %v154
    %v156 = vpop.f32.mrf.mxu0
    %v157 = vpop.f32.mrf.mxu0
    %v158 = vadd.f32 %v41, %v157
    %v159 = vpop.f32.mrf.mxu0
    %160 = vmatprep.mubr.bf16.mxu0 0
    %161 = vmatmul.mubr.bf16.gmra.mxu0 %v100
    %v162 = vpop.f32.mrf.mxu0
    %v163 = vadd.f32 %v41, %v162
    %v164 = vpop.f32.mrf.mxu0
    %v165 = vpop.f32.mrf.mxu0
    %v166 = vadd.f32 %v41, %v165
    %v167 = vpop.f32.mrf.mxu0
    %168 = vmatprep.mubr.bf16.mxu0 0
    %169 = vmatmul.mubr.bf16.gmra.mxu0 %v103
    %v170 = vpop.f32.mrf.mxu0
    %v171 = vadd.f32 %v41, %v170
    %v172 = vpop.f32.mrf.mxu0
    %v173 = vpop.f32.mrf.mxu0
    %v174 = vadd.f32 %v41, %v173
    %v175 = vpop.f32.mrf.mxu0
    %176 = vmatprep.mubr.bf16.mxu0 0
    %177 = vmatmul.mubr.bf16.gmra.mxu0 %v106
    %v178 = vpop.f32.mrf.mxu0
    %v179 = vadd.f32 %v41, %v178
    %v180 = vpop.f32.mrf.mxu0
    %v181 = vpop.f32.mrf.mxu0
    %v182 = vadd.f32 %v41, %v181
    %v183 = vpop.f32.mrf.mxu0
    %184 = vmatprep.mubr.bf16.mxu0 0
    %185 = vmatmul.mubr.bf16.gmra.mxu0 %v109
    %v186 = vpop.f32.mrf.mxu0
    %v187 = vadd.f32 %v41, %v186
    %v188 = vpop.f32.mrf.mxu0
    %v189 = vpop.f32.mrf.mxu0
    %v190 = vadd.f32 %v41, %v189
    %v191 = vpop.f32.mrf.mxu0
    %192 = vmatprep.mubr.bf16.mxu0 0
    %193 = vmatmul.mubr.bf16.gmra.mxu0 %v112
    %v194 = vpop.f32.mrf.mxu0
    %v195 = vadd.f32 %v41, %v194
    %v196 = vpop.f32.mrf.mxu0
    %v197 = vpop.f32.mrf.mxu0
    %v198 = vadd.f32 %v41, %v197
    %v199 = vpop.f32.mrf.mxu0
    %200 = vmatprep.mubr.bf16.mxu0 0
    %201 = vmatmul.mubr.bf16.gmra.mxu0 %v115
    %v202 = vpop.f32.mrf.mxu0
    %v203 = vadd.f32 %v41, %v202
    %v204 = vpop.f32.mrf.mxu0
    %v205 = vpop.f32.mrf.mxu0
    %v206 = vadd.f32 %v41, %v205
    %v207 = vpop.f32.mrf.mxu0
    %208 = vmatprep.mubr.bf16.mxu0 0
    %209 = vmatmul.mubr.bf16.gmra.mxu0 %v118
    %v210 = vpop.f32.mrf.mxu0
    %v211 = vadd.f32 %v41, %v210
    %v212 = vpop.f32.mrf.mxu0
    %v213 = vpop.f32.mrf.mxu0
    %v214 = vadd.f32 %v41, %v213
    %v215 = vpop.f32.mrf.mxu0
    %216 = vdwg.mxu0
    %217 = vst [vmem:[#allocation2] sm:$0xff] %v155
    %218 = vst [vmem:[#allocation2 + $0x8] sm:$0xff] %v158
    %219 = vst [vmem:[#allocation2 + $0x10] sm:$0xff] %v163
    %220 = vst [vmem:[#allocation2 + $0x18] sm:$0xff] %v166
    %221 = vst [vmem:[#allocation2 + $0x20] sm:$0xff] %v171
    %222 = vst [vmem:[#allocation2 + $0x28] sm:$0xff] %v174
    %223 = vst [vmem:[#allocation2 + $0x30] sm:$0xff] %v179
    %224 = vst [vmem:[#allocation2 + $0x38] sm:$0xff] %v182
    %225 = vst [vmem:[#allocation2 + $0x40] sm:$0xff] %v187
    %226 = vst [vmem:[#allocation2 + $0x48] sm:$0xff] %v190
    %227 = vst [vmem:[#allocation2 + $0x50] sm:$0xff] %v195
    %228 = vst [vmem:[#allocation2 + $0x58] sm:$0xff] %v198
    %229 = vst [vmem:[#allocation2 + $0x60] sm:$0xff] %v203
    %230 = vst [vmem:[#allocation2 + $0x68] sm:$0xff] %v206
    %231 = vst [vmem:[#allocation2 + $0x70] sm:$0xff] %v211
    %232 = vst [vmem:[#allocation2 + $0x78] sm:$0xff] %v214
    // Predicated region
    $region14: #{tpu_custom_call.1} parent=1 // pred_check
      _
    $region15: #{tpu_custom_call.1} parent=1 // pred_check_branch
      %234 = sbr.rel (0) target = $region17
    $region16: #{tpu_custom_call.1} parent=1 // pred_region
      %s236 = ssub.s32 2048, 2048
      %237 = vsyncadd [#allocation3], %s236
      %s238 = sshll.u32 [#allocation2], 4
      %s239 = int_to_ptr.vmem [resolvable:$true] %s238
      %244 = dma.vmem_to_hbm [thread:$0]  %s239, 2048, %s3, [#allocation3], 128, 128, 8
    $region17: #{tpu_custom_call.1} parent=1 // pred_fallthru
      _
    // Predicated region
    $region18: #{tpu_custom_call.1} parent=1 // pred_check
      _
    $region19: #{tpu_custom_call.1} parent=1 // pred_check_branch
      %246 = sbr.rel (0) target = $region21
    $region20: #{tpu_custom_call.1} parent=1 // pred_region
      %247 = dma.done [#allocation3], 2048
    $region21: #{tpu_custom_call.1} parent=1 // pred_fallthru
      _
    %248 = vsyncpa [#allocation3], 1

</llo_original>
